<compile_context>
chip_gen: v7x
topology: tpu7x:2x2x1
jax: 0.10.0
libtpu: 0.0.40
codegen_flags: <defaults>
</compile_context>

<pallas_src>
import math
import jax
import jax.numpy as jnp
from jax.experimental import pallas as pl
from jax.experimental.pallas import tpu as pltpu

NEG_SLOPE = 0.01  # nn.LeakyReLU default negative_slope


def _round_up(n, m):
    return ((n + m - 1) // m) * m


def adapter_kernel(x_ref, w1_ref, b1_ref, w2_ref, o_ref):
    # Blocks (leading group axis squeezed out via block_shape None):
    #   x_ref : (TB, Din_p)     bf16 packed activations for this batch tile
    #   w1_ref: (Din_p, H_p)    bf16 block-diagonal hidden weights (this group)
    #   b1_ref: (1, H_p)        f32 packed hidden bias (this group)
    #   w2_ref: (H_p, Dout_p)   bf16 block-diagonal last weights (this group)
    #   o_ref : (TB, Dout_p)
    h = jnp.dot(x_ref[...], w1_ref[...], preferred_element_type=jnp.float32)
    h = h + b1_ref[...]
    # LeakyReLU: max(h, 0.01*h) == where(h>0, h, 0.01*h) for slope < 1.
    h = jnp.maximum(h, NEG_SLOPE * h)
    o = jnp.dot(h.astype(w2_ref.dtype), w2_ref[...],
                preferred_element_type=jnp.float32)
    o_ref[...] = o.astype(o_ref.dtype)


def prepare_adapter_params(w1, b1, w2, compute_dtype=jnp.bfloat16,
                           lane_target=128):
    """One-time parameter prep (hoisted out of the per-call path).

    w1: (L, 1, H, D_in)   torch-layout hidden weight
    b1: (L, 1, H)         hidden bias
    w2: (L, 1, D_out, H)  torch-layout last weight

    Returns a dict with pre-transposed, block-diagonally packed, lane-padded,
    compute-dtype weights plus static metadata.
    """
    L, _, H, D_in = w1.shape
    D_out = w2.shape[2]
    max_dim = max(D_in, H, D_out)
    # Pack G layers per group so G*max_dim ~ 128 lanes (G=1 for large dims).
    G = max(1, min(L, lane_target // max_dim)) if max_dim < lane_target else 1
    Lp = _round_up(L, G)
    n_groups = Lp // G

    # Pad the layer axis with zero layers (inert; sliced off after the kernel).
    w1 = jnp.pad(w1, ((0, Lp - L), (0, 0), (0, 0), (0, 0)))
    b1 = jnp.pad(b1, ((0, Lp - L), (0, 0), (0, 0)))
    w2 = jnp.pad(w2, ((0, Lp - L), (0, 0), (0, 0), (0, 0)))

    # Pre-transpose once: torch (out, in) -> (in, out) so the kernel never
    # materializes .T (no in-kernel XLU transposes).
    w1t = jnp.transpose(w1[:, 0], (0, 2, 1)).reshape(n_groups, G, D_in, H)
    w2t = jnp.transpose(w2[:, 0], (0, 2, 1)).reshape(n_groups, G, H, D_out)

    # Block-diagonal packing: layer g of a group occupies rows [g*D_in, (g+1)*D_in)
    # and cols [g*H, (g+1)*H); off-diagonal blocks are zero, so layers stay
    # independent while sharing one lane-dense MXU pass.
    eye = jnp.eye(G, dtype=w1t.dtype)
    w1_bd = jnp.einsum("ngdh,gk->ngdkh", w1t, eye).reshape(n_groups, G * D_in, G * H)
    w2_bd = jnp.einsum("ngho,gk->nghko", w2t, eye).reshape(n_groups, G * H, G * D_out)
    b1_bd = b1.reshape(n_groups, 1, G * H)

    # Lane-dense padding of the packed feature dims (exact: zeros are inert).
    din_p = _round_up(G * D_in, 128)
    h_p = _round_up(G * H, 128)
    dout_p = _round_up(G * D_out, 128)

    w1p = jnp.pad(w1_bd, ((0, 0), (0, din_p - G * D_in), (0, h_p - G * H))
                  ).astype(compute_dtype)
    b1p = jnp.pad(b1_bd, ((0, 0), (0, 0), (0, h_p - G * H))).astype(jnp.float32)
    w2p = jnp.pad(w2_bd, ((0, 0), (0, h_p - G * H), (0, dout_p - G * D_out))
                  ).astype(compute_dtype)

    meta = dict(L=L, G=G, n_groups=n_groups, D_in=D_in, H=H, D_out=D_out,
                din_p=din_p, h_p=h_p, dout_p=dout_p, compute_dtype=compute_dtype)
    return {"w1": w1p, "b1": b1p, "w2": w2p, "meta": meta}


def adapter_forward(x, params, *, max_batch_tile=512,
                    vmem_budget_bytes=20 * 1024 * 1024):
    """Pallas forward for the non-shared Adapter with one hidden layer.

    x: (L, B, D_in); params from prepare_adapter_params. Returns (L, B, D_out).
    """
    meta = params["meta"]
    L, G, n_groups = meta["L"], meta["G"], meta["n_groups"]
    D_in, D_out = meta["D_in"], meta["D_out"]
    din_p, h_p, dout_p = meta["din_p"], meta["h_p"], meta["dout_p"]
    cdt = meta["compute_dtype"]
    Lp = n_groups * G

    Lx, B, Din_x = x.shape
    assert Lx == L and Din_x == D_in
    out_dtype = x.dtype

    # Pack activations to match the block-diagonal weight layout:
    # (L, B, D_in) -> (n_groups, B, G*D_in), layer g's features in lane block g.
    xp = jnp.pad(x, ((0, Lp - L), (0, 0), (0, 0)))
    xp = xp.reshape(n_groups, G, B, D_in).transpose(0, 2, 1, 3)
    xp = xp.reshape(n_groups, B, G * D_in)
    b_p = _round_up(B, 8)  # sublane-align the batch
    xp = jnp.pad(xp, ((0, 0), (0, b_p - B), (0, din_p - G * D_in))).astype(cdt)

    # Batch tile from an explicit VMEM byte budget (double-buffered weight
    # group + double-buffered activation/output tiles).
    itm = jnp.dtype(cdt).itemsize
    w_bytes = 2 * itm * (din_p * h_p + h_p * dout_p) + 2 * 4 * h_p
    per_row = 2 * (din_p * itm + dout_p * jnp.dtype(out_dtype).itemsize)
    tb_budget = max(8, ((vmem_budget_bytes - w_bytes) // per_row) // 8 * 8)
    tb = int(min(b_p, tb_budget, max_batch_tile))
    # If the grid would be a single step, split the batch so the second
    # TensorCore (v7x megacore) has work.
    if n_groups == 1 and tb >= b_p and b_p >= 16:
        tb = _round_up(pl.cdiv(b_p, 2), 8)
    n_b = pl.cdiv(b_p, tb)  # ragged last block handled by Pallas (no extra pad)

    out = pl.pallas_call(
        adapter_kernel,
        out_shape=jax.ShapeDtypeStruct((n_groups, b_p, dout_p), out_dtype),
        grid_spec=pltpu.PrefetchScalarGridSpec(
            num_scalar_prefetch=0,
            grid=(n_groups, n_b),
            in_specs=[
                # Activations: tiled over (group, batch).
                pl.BlockSpec((None, tb, din_p), lambda g, i: (g, i, 0)),
                # Weights / bias: one group per step; constant across the
                # inner batch axis so the DMA is skipped while g is unchanged.
                pl.BlockSpec((None, din_p, h_p), lambda g, i: (g, 0, 0)),
                pl.BlockSpec((None, 1, h_p), lambda g, i: (g, 0, 0)),
                pl.BlockSpec((None, h_p, dout_p), lambda g, i: (g, 0, 0)),
            ],
            out_specs=pl.BlockSpec((None, tb, dout_p), lambda g, i: (g, i, 0)),
        ),
        compiler_params=pltpu.CompilerParams(
            dimension_semantics=("parallel", "parallel"),
            vmem_limit_bytes=32 * 1024 * 1024),
    )(xp, params["w1"], params["b1"], params["w2"])

    # Strip padding and unpack the block-diagonal layout back to (L, B, D_out).
    o = out[:, :B, :G * D_out]
    o = o.reshape(n_groups, B, G, D_out).transpose(0, 2, 1, 3)
    return o.reshape(Lp, B, D_out)[:L]


def adapter_forward_ref(x, w1, b1, w2):
    """Pure-JAX f32 reference mirroring the torch broadcasting semantics."""
    xu = x[..., None]                                  # (L, B, D_in, 1)
    h = jnp.matmul(w1, xu) + b1[..., None]             # (L, B, H, 1)
    h = jnp.where(h > 0, h, NEG_SLOPE * h)             # LeakyReLU
    o = jnp.matmul(w2, h)                              # (L, B, D_out, 1)
    return o[..., 0]


def adapter_forward_ref_bf16(x, w1, b1, w2):
    """Reference with the same bf16 input rounding as the kernel (tight check)."""
    f = lambda a: a.astype(jnp.bfloat16).astype(jnp.float32)
    xu = f(x)[..., None]
    h = jnp.matmul(f(w1), xu) + b1[..., None]
    h = jnp.maximum(h, NEG_SLOPE * h)
    o = jnp.matmul(f(w2), f(h))
    return o[..., 0]


if __name__ == "__main__":
    def run_case(L, B, D_IN, H, D_OUT, seed=0, max_batch_tile=512):
        key = jax.random.PRNGKey(seed)
        kx, kw1, kb1, kw2 = jax.random.split(key, 4)

        x = jax.random.normal(kx, (L, B, D_IN), dtype=jnp.float32)
        # Shapes from Adapter.__init__ (non-shared, one hidden layer):
        #   weights[0]: (L, 1, H, D_IN)  kaiming_uniform(a=sqrt(5))
        #   biases[0] : (L, 1, H)        U(-1/sqrt(fan_in), 1/sqrt(fan_in))
        #   weights[-1]: (L, 1, D_OUT, H) (torch zero-inits this; we use small
        #                                  random values so the compute is exercised)
        bound_w1 = 1.0 / math.sqrt(D_IN)
        w1 = jax.random.uniform(kw1, (L, 1, H, D_IN), jnp.float32, -bound_w1, bound_w1)
        b1 = jax.random.uniform(kb1, (L, 1, H), jnp.float32, -bound_w1, bound_w1)
        bound_w2 = 1.0 / math.sqrt(H)
        w2 = jax.random.uniform(kw2, (L, 1, D_OUT, H), jnp.float32, -bound_w2, bound_w2)
        # TODO(synk): shared / need_bias / need_norm / training-mask / memory
        # refine variants of forward are not wired in (module defaults used).

        params = prepare_adapter_params(w1, b1, w2)   # one-time prep, hoisted
        out = adapter_forward(x, params, max_batch_tile=max_batch_tile)
        jax.block_until_ready(out)

        assert out.shape == (L, B, D_OUT)
        ref32 = adapter_forward_ref(x, w1, b1, w2)
        ref16 = adapter_forward_ref_bf16(x, w1, b1, w2)
        assert jnp.allclose(out, ref32, atol=5e-2, rtol=5e-2), "mismatch vs f32 reference"
        assert jnp.allclose(out, ref16, atol=2e-3, rtol=2e-3), "mismatch vs bf16 reference"
        return out

    # Case 1: module-default tiny shapes; single grid step.
    run_case(L=4, B=8, D_IN=32, H=16, D_OUT=32, seed=0)
    # Case 2: multi-group grid + multiple batch tiles with a ragged last block
    # (re-validates the tiled path as requested by the review).
    run_case(L=8, B=24, D_IN=32, H=16, D_OUT=32, seed=0, max_batch_tile=16)

    print("KERNEL_OK")
</pallas_src>

<mosaic_0001>
module attributes {stable_mosaic.version = 11 : i64} {
  func.func @adapter_kernel(%arg0: i32, %arg1: i32, %arg2: memref<1x8x128xbf16, #tpu.memory_space<vmem>>, %arg3: memref<1x128x128xbf16, #tpu.memory_space<vmem>>, %arg4: memref<1x1x128xf32, #tpu.memory_space<vmem>>, %arg5: memref<1x128x128xbf16, #tpu.memory_space<vmem>>, %arg6: memref<1x8x128xf32, #tpu.memory_space<vmem>>) attributes {dimension_semantics = [#tpu.dimension_semantics<parallel>, #tpu.dimension_semantics<parallel>], iteration_bounds = array<i64: 1, 1>, scalar_prefetch = 0 : i64, scratch_operands = 0 : i64, tpu.core_type = #tpu.core_type<tc>, window_params = [{transform_indices = @transform_0, window_bounds = array<i64: 1, 8, 128>}, {transform_indices = @transform_1, window_bounds = array<i64: 1, 128, 128>}, {transform_indices = @transform_2, window_bounds = array<i64: 1, 1, 128>}, {transform_indices = @transform_3, window_bounds = array<i64: 1, 128, 128>}, {transform_indices = @transform_4, window_bounds = array<i64: 1, 8, 128>}]} {
    %c0 = arith.constant 0 : index
    %c0_0 = arith.constant 0 : index
    %c0_1 = arith.constant 0 : index
    %0 = vector.load %arg2[%c0, %c0_0, %c0_1] : memref<1x8x128xbf16, #tpu.memory_space<vmem>>, vector<1x8x128xbf16>
    %1 = vector.shape_cast %0 : vector<1x8x128xbf16> to vector<8x128xbf16>
    %c0_2 = arith.constant 0 : index
    %c0_3 = arith.constant 0 : index
    %c0_4 = arith.constant 0 : index
    %2 = vector.load %arg3[%c0_2, %c0_3, %c0_4] : memref<1x128x128xbf16, #tpu.memory_space<vmem>>, vector<1x128x128xbf16>
    %3 = vector.shape_cast %2 : vector<1x128x128xbf16> to vector<128x128xbf16>
    %cst = arith.constant dense<0.000000e+00> : vector<8x128xf32>
    %4 = tpu.matmul %1, %3, %cst {dimension_numbers = #tpu.dot_dimension_numbers<[1], [0], [0], [1], [0, 0, 1, 1], [], []>} : vector<8x128xbf16>, vector<128x128xbf16>, vector<8x128xf32> -> vector<8x128xf32>
    %c0_5 = arith.constant 0 : index
    %c0_6 = arith.constant 0 : index
    %c0_7 = arith.constant 0 : index
    %5 = vector.load %arg4[%c0_5, %c0_6, %c0_7] : memref<1x1x128xf32, #tpu.memory_space<vmem>>, vector<1x1x128xf32>
    %6 = vector.shape_cast %5 : vector<1x1x128xf32> to vector<1x128xf32>
    %7 = vector.broadcast %6 : vector<1x128xf32> to vector<8x128xf32>
    %8 = arith.addf %4, %7 : vector<8x128xf32>
    %cst_8 = arith.constant 0.00999999977 : f32
    %9 = vector.broadcast %cst_8 : f32 to vector<8x128xf32>
    %10 = arith.mulf %9, %8 : vector<8x128xf32>
    %11 = arith.maximumf %8, %10 : vector<8x128xf32>
    %12 = arith.truncf %11 : vector<8x128xf32> to vector<8x128xbf16>
    %c0_9 = arith.constant 0 : index
    %c0_10 = arith.constant 0 : index
    %c0_11 = arith.constant 0 : index
    %13 = vector.load %arg5[%c0_9, %c0_10, %c0_11] : memref<1x128x128xbf16, #tpu.memory_space<vmem>>, vector<1x128x128xbf16>
    %14 = vector.shape_cast %13 : vector<1x128x128xbf16> to vector<128x128xbf16>
    %cst_12 = arith.constant dense<0.000000e+00> : vector<8x128xf32>
    %15 = tpu.matmul %12, %14, %cst_12 {dimension_numbers = #tpu.dot_dimension_numbers<[1], [0], [0], [1], [0, 0, 1, 1], [], []>} : vector<8x128xbf16>, vector<128x128xbf16>, vector<8x128xf32> -> vector<8x128xf32>
    %c0_13 = arith.constant 0 : index
    %c0_14 = arith.constant 0 : index
    %c0_15 = arith.constant 0 : index
    %16 = vector.load %arg6[%c0_13, %c0_14, %c0_15] : memref<1x8x128xf32, #tpu.memory_space<vmem>>, vector<1x8x128xf32>
    %17 = vector.shape_cast %16 : vector<1x8x128xf32> to vector<8x128xf32>
    %18 = vector.shape_cast %15 : vector<8x128xf32> to vector<1x8x128xf32>
    tpu.vector_store %arg6[%c0_13, %c0_14, %c0_15], %18 {strides = array<i32>} : memref<1x8x128xf32, #tpu.memory_space<vmem>>, vector<1x8x128xf32>,
    return
  }
  func.func @transform_0(%arg0: i32, %arg1: i32) -> (i32, i32, i32) {
    %c0_i32 = arith.constant 0 : i32
    %c0_i32_0 = arith.constant 0 : i32
    return %arg0, %arg1, %c0_i32 : i32, i32, i32
  }
  func.func @transform_1(%arg0: i32, %arg1: i32) -> (i32, i32, i32) {
    %c0_i32 = arith.constant 0 : i32
    %c0_i32_0 = arith.constant 0 : i32
    %c0_i32_1 = arith.constant 0 : i32
    return %arg0, %c0_i32, %c0_i32_0 : i32, i32, i32
  }
  func.func @transform_2(%arg0: i32, %arg1: i32) -> (i32, i32, i32) {
    %c0_i32 = arith.constant 0 : i32
    %c0_i32_0 = arith.constant 0 : i32
    %c0_i32_1 = arith.constant 0 : i32
    return %arg0, %c0_i32, %c0_i32_0 : i32, i32, i32
  }
  func.func @transform_3(%arg0: i32, %arg1: i32) -> (i32, i32, i32) {
    %c0_i32 = arith.constant 0 : i32
    %c0_i32_0 = arith.constant 0 : i32
    %c0_i32_1 = arith.constant 0 : i32
    return %arg0, %c0_i32, %c0_i32_0 : i32, i32, i32
  }
  func.func @transform_4(%arg0: i32, %arg1: i32) -> (i32, i32, i32) {
    %c0_i32 = arith.constant 0 : i32
    %c0_i32_0 = arith.constant 0 : i32
    return %arg0, %arg1, %c0_i32 : i32, i32, i32
  }
}

</mosaic_0001>

<llo_original>
// kernel: tpu_custom_call.1
$region0: #{tpu_custom_call.1}
  #allocation0 [shape = 'u32[]', space=smem, size = 0x4, offset = 0x4, fixed_abs, tag = 'smem constant byte address 0x4 - core index']
  #allocation1 [shape = 'u32[144,128]{1,0:T(1,128)}', space=vmem, size = 0x12000, scoped, tag = 'internal scratch']
  %s0 = inlined_call_operand.hbm [shape: bf16[1,8,128], index: 0, kind: input, shape index: {}]
  %s1 = inlined_call_operand.hbm [shape: bf16[1,128,128], index: 1, kind: input, shape index: {}]
  %s2 = inlined_call_operand.vmem [shape: f32[1,1,128], index: 2, kind: input, shape index: {}]
  %s3 = inlined_call_operand.hbm [shape: bf16[1,128,128], index: 3, kind: input, shape index: {}]
  %s4 = inlined_call_operand.hbm [shape: f32[1,8,128], index: 4, kind: output, shape index: {}]
  %s5 = sld [smem:[#allocation0]]
  $region38: #{tpu_custom_call.1} parent=0
    _
  %s7 = ssub.s32 1, %s5
  %s8 = scalar_select 0, %s7, %s5
  $region1: #{tpu_custom_call.1} parent=0
    #allocation2 [shape = 'u8[2048]{0}', space=vmem, size = 0x800, scoped, tag = 'input window, operand 0, single buffered']
    #allocation3 [shape = 's32[1]{0}', space=sflag, size = 0x4, scoped, tag = 'scoped memory for tpu_custom_call.1']
    #allocation4 [shape = 's32[1]{0}', space=sflag, size = 0x4, scoped, tag = 'scoped memory for tpu_custom_call.1']
    #allocation5 [shape = 'u8[32768]{0}', space=vmem, size = 0x8000, scoped, tag = 'input window, operand 1, single buffered']
    #allocation6 [shape = 's32[1]{0}', space=sflag, size = 0x4, scoped, tag = 'scoped memory for tpu_custom_call.1']
    #allocation7 [shape = 'u8[32768]{0}', space=vmem, size = 0x8000, scoped, tag = 'input window, operand 3, single buffered']
    #allocation8 [shape = 'u8[4096]{0}', space=vmem, size = 0x1000, scoped, tag = 'output window, operand 0, single buffered']
    %9 = vsyncpa [#allocation3], 0
    %10 = vsyncpa [#allocation6], 0
    %11 = vsyncpa [#allocation4], 0
    // Predicated region
    $region2: #{tpu_custom_call.1} parent=1 // pred_check
      _
    $region3: #{tpu_custom_call.1} parent=1 // pred_check_branch
      %13 = sbr.rel (0) target = $region5
    $region4: #{tpu_custom_call.1} parent=1 // pred_region
      %s15 = ssub.s32 64, 64
      %16 = vsyncadd [#allocation3], %s15
      %s18 = sshll.u32 [#allocation2], 4
      %s19 = int_to_ptr.vmem [resolvable:$true] %s18
      %21 = dma.hbm_to_vmem [thread:$0]  %s0, 64, %s19, [#allocation3]
    $region5: #{tpu_custom_call.1} parent=1 // pred_fallthru
      _
    // Predicated region
    $region6: #{tpu_custom_call.1} parent=1 // pred_check
      _
    $region7: #{tpu_custom_call.1} parent=1 // pred_check_branch
      %23 = sbr.rel (0) target = $region9
    $region8: #{tpu_custom_call.1} parent=1 // pred_region
      %s25 = ssub.s32 1024, 1024
      %26 = vsyncadd [#allocation6], %s25
      %s27 = sshll.u32 [#allocation5], 4
      %s28 = int_to_ptr.vmem [resolvable:$true] %s27
      %33 = dma.hbm_to_vmem [thread:$0]  %s1, 1024, %s28, [#allocation6], 64, 64, 4
    $region9: #{tpu_custom_call.1} parent=1 // pred_fallthru
      _
    // Predicated region
    $region10: #{tpu_custom_call.1} parent=1 // pred_check
      _
    $region11: #{tpu_custom_call.1} parent=1 // pred_check_branch
      %35 = sbr.rel (0) target = $region13
    $region12: #{tpu_custom_call.1} parent=1 // pred_region
      _
    $region13: #{tpu_custom_call.1} parent=1 // pred_fallthru
      _
    // Predicated region
    $region14: #{tpu_custom_call.1} parent=1 // pred_check
      _
    $region15: #{tpu_custom_call.1} parent=1 // pred_check_branch
      %37 = sbr.rel (0) target = $region17
    $region16: #{tpu_custom_call.1} parent=1 // pred_region
      %s39 = ssub.s32 1024, 1024
      %40 = vsyncadd [#allocation6], %s39
      %s41 = sshll.u32 [#allocation7], 4
      %s42 = int_to_ptr.vmem [resolvable:$true] %s41
      %47 = dma.hbm_to_vmem [thread:$0]  %s3, 1024, %s42, [#allocation6], 64, 64, 4
    $region17: #{tpu_custom_call.1} parent=1 // pred_fallthru
      _
    // Predicated region
    $region18: #{tpu_custom_call.1} parent=1 // pred_check
      _
    $region19: #{tpu_custom_call.1} parent=1 // pred_check_branch
      %49 = sbr.rel (0) target = $region21
    $region20: #{tpu_custom_call.1} parent=1 // pred_region
      %50 = dma.done [#allocation3], 64
    $region21: #{tpu_custom_call.1} parent=1 // pred_fallthru
      _
    // Predicated region
    $region22: #{tpu_custom_call.1} parent=1 // pred_check
      _
    $region23: #{tpu_custom_call.1} parent=1 // pred_check_branch
      %52 = sbr.rel (0) target = $region25
    $region24: #{tpu_custom_call.1} parent=1 // pred_region
      %53 = dma.done [#allocation6], 1024
    $region25: #{tpu_custom_call.1} parent=1 // pred_fallthru
      _
    // Predicated region
    $region26: #{tpu_custom_call.1} parent=1 // pred_check
      _
    $region27: #{tpu_custom_call.1} parent=1 // pred_check_branch
      %55 = sbr.rel (0) target = $region29
    $region28: #{tpu_custom_call.1} parent=1 // pred_region
      %56 = dma.done [#allocation6], 1024
    $region29: #{tpu_custom_call.1} parent=1 // pred_fallthru
      _
    %v58 = vld [vmem:[#allocation2] sm:$0xf]
    %v59 = vld [vmem:[#allocation5] sm:$0xf]
    %v60 = vld [vmem:[#allocation5 + $0x4] sm:$0xf]
    %v61 = vld [vmem:[#allocation5 + $0x8] sm:$0xf]
    %v62 = vld [vmem:[#allocation5 + $0xc] sm:$0xf]
    %v63 = vld [vmem:[#allocation5 + $0x10] sm:$0xf]
    %v64 = vld [vmem:[#allocation5 + $0x14] sm:$0xf]
    %v65 = vld [vmem:[#allocation5 + $0x18] sm:$0xf]
    %v66 = vld [vmem:[#allocation5 + $0x1c] sm:$0xf]
    %v67 = vld [vmem:[#allocation5 + $0x20] sm:$0xf]
    %v68 = vld [vmem:[#allocation5 + $0x24] sm:$0xf]
    %v69 = vld [vmem:[#allocation5 + $0x28] sm:$0xf]
    %v70 = vld [vmem:[#allocation5 + $0x2c] sm:$0xf]
    %v71 = vld [vmem:[#allocation5 + $0x30] sm:$0xf]
    %v72 = vld [vmem:[#allocation5 + $0x34] sm:$0xf]
    %v73 = vld [vmem:[#allocation5 + $0x38] sm:$0xf]
    %v74 = vld [vmem:[#allocation5 + $0x3c] sm:$0xf]
    %v75 = vld [vmem:[%s2] sm:$0x1]
    %v77 = vlaneseq
    %v78 = vshrl.u32 %v77, 7
    %v79 = vsub.s32 0, %v78
    %v80 = vrot.slane %v75, %v79
    %v98 = vunpack.c.l.b16 %v59
    %v99 = vunpack.c.l.b16 %v60
    %v100 = vunpack.c.l.b16 %v61
    %v101 = vunpack.c.l.b16 %v62
    %v102 = vunpack.c.l.b16 %v63
    %v103 = vunpack.c.l.b16 %v64
    %v104 = vunpack.c.l.b16 %v65
    %v105 = vunpack.c.l.b16 %v66
    %v106 = vunpack.c.l.b16 %v67
    %v107 = vunpack.c.l.b16 %v68
    %v108 = vunpack.c.l.b16 %v69
    %v109 = vunpack.c.l.b16 %v70
    %v110 = vunpack.c.l.b16 %v71
    %v111 = vunpack.c.l.b16 %v72
    %v112 = vunpack.c.l.b16 %v73
    %v113 = vunpack.c.l.b16 %v74
    %v114 = vpack.c.b16 %v99, %v98
    %v115 = vpack.c.b16 %v101, %v100
    %v116 = vpack.c.b16 %v103, %v102
    %v117 = vpack.c.b16 %v105, %v104
    %v118 = vpack.c.b16 %v107, %v106
    %v119 = vpack.c.b16 %v109, %v108
    %v120 = vpack.c.b16 %v111, %v110
    %v121 = vpack.c.b16 %v113, %v112
    %130 = vmatprep.subr.bf16.mxu0 0
    %131 = vmatpush1.bf16.msra.mxu0 %v114
    %132 = vmatprep.subr.bf16.mxu0 0
    %133 = vmatpush1.bf16.msra.mxu0 %v115
    %134 = vmatprep.subr.bf16.mxu0 0
    %135 = vmatpush1.bf16.msra.mxu0 %v116
    %136 = vmatprep.subr.bf16.mxu0 0
    %137 = vmatpush1.bf16.msra.mxu0 %v117
    %138 = vmatprep.subr.bf16.mxu0 0
    %139 = vmatpush1.bf16.msra.mxu0 %v118
    %140 = vmatprep.subr.bf16.mxu0 0
    %141 = vmatpush1.bf16.msra.mxu0 %v119
    %142 = vmatprep.subr.bf16.mxu0 0
    %143 = vmatpush1.bf16.msra.mxu0 %v120
    %144 = vmatprep.subr.bf16.mxu0 0
    %145 = vmatpush1.bf16.msra.mxu0 %v121
    %146 = vmatprep.subr.bf16.mxu0 0
    %147 = vmatpush1.bf16.msra.mxu0 0
    %148 = vmatprep.subr.bf16.mxu0 0
    %149 = vmatpush1.bf16.msra.mxu0 0
    %150 = vmatprep.subr.bf16.mxu0 0
    %151 = vmatpush1.bf16.msra.mxu0 0
    %152 = vmatprep.subr.bf16.mxu0 0
    %153 = vmatpush1.bf16.msra.mxu0 0
    %154 = vmatprep.subr.bf16.mxu0 0
    %155 = vmatpush1.bf16.msra.mxu0 0
    %156 = vmatprep.subr.bf16.mxu0 0
    %157 = vmatpush1.bf16.msra.mxu0 0
    %158 = vmatprep.subr.bf16.mxu0 0
    %159 = vmatpush1.bf16.msra.mxu0 0
    %160 = vmatprep.subr.bf16.mxu0 0
    %161 = vmatpush1.bf16.msra.mxu0 0
    %162 = vmatprep.mubr.bf16.mxu0 0
    %163 = vmatmul.mubr.bf16.gmra.mrb[0].mxu0 %v58
    %v164 = vpop.f32.mrb[0].mxu0
    %v165 = vadd.f32 %v80, %v164
    %v166 = vpop.f32.mrb[0].mxu0
    %v167 = vpop.f32.mrb[0].mxu0
    %v168 = vpop.f32.mrb[0].mxu0
    %169 = vdwg.mxu0
    %v170 = vmul.f32 %v165, 0.01
    %v171 = vmax.f32 %v165, %v170
    %v172 = vpack.c.bf16 %v171, %v171
    %v173 = vld [vmem:[#allocation7] sm:$0xf]
    %v174 = vld [vmem:[#allocation7 + $0x4] sm:$0xf]
    %v175 = vld [vmem:[#allocation7 + $0x8] sm:$0xf]
    %v176 = vld [vmem:[#allocation7 + $0xc] sm:$0xf]
    %v177 = vld [vmem:[#allocation7 + $0x10] sm:$0xf]
    %v178 = vld [vmem:[#allocation7 + $0x14] sm:$0xf]
    %v179 = vld [vmem:[#allocation7 + $0x18] sm:$0xf]
    %v180 = vld [vmem:[#allocation7 + $0x1c] sm:$0xf]
    %v181 = vld [vmem:[#allocation7 + $0x20] sm:$0xf]
    %v182 = vld [vmem:[#allocation7 + $0x24] sm:$0xf]
    %v183 = vld [vmem:[#allocation7 + $0x28] sm:$0xf]
    %v184 = vld [vmem:[#allocation7 + $0x2c] sm:$0xf]
    %v185 = vld [vmem:[#allocation7 + $0x30] sm:$0xf]
    %v186 = vld [vmem:[#allocation7 + $0x34] sm:$0xf]
    %v187 = vld [vmem:[#allocation7 + $0x38] sm:$0xf]
    %v188 = vld [vmem:[#allocation7 + $0x3c] sm:$0xf]
    %v205 = vunpack.c.l.b16 %v173
    %v206 = vunpack.c.l.b16 %v174
    %v207 = vunpack.c.l.b16 %v175
    %v208 = vunpack.c.l.b16 %v176
    %v209 = vunpack.c.l.b16 %v177
    %v210 = vunpack.c.l.b16 %v178
    %v211 = vunpack.c.l.b16 %v179
    %v212 = vunpack.c.l.b16 %v180
    %v213 = vunpack.c.l.b16 %v181
    %v214 = vunpack.c.l.b16 %v182
    %v215 = vunpack.c.l.b16 %v183
    %v216 = vunpack.c.l.b16 %v184
    %v217 = vunpack.c.l.b16 %v185
    %v218 = vunpack.c.l.b16 %v186
    %v219 = vunpack.c.l.b16 %v187
    %v220 = vunpack.c.l.b16 %v188
    %v221 = vpack.c.b16 %v206, %v205
    %v222 = vpack.c.b16 %v208, %v207
    %v223 = vpack.c.b16 %v210, %v209
    %v224 = vpack.c.b16 %v212, %v211
    %v225 = vpack.c.b16 %v214, %v213
    %v226 = vpack.c.b16 %v216, %v215
    %v227 = vpack.c.b16 %v218, %v217
    %v228 = vpack.c.b16 %v220, %v219
    %237 = vmatprep.subr.bf16.mxu0 0
    %238 = vmatpush1.bf16.msra.mxu0 %v221
    %239 = vmatprep.subr.bf16.mxu0 0
    %240 = vmatpush1.bf16.msra.mxu0 %v222
    %241 = vmatprep.subr.bf16.mxu0 0
    %242 = vmatpush1.bf16.msra.mxu0 %v223
    %243 = vmatprep.subr.bf16.mxu0 0
    %244 = vmatpush1.bf16.msra.mxu0 %v224
    %245 = vmatprep.subr.bf16.mxu0 0
    %246 = vmatpush1.bf16.msra.mxu0 %v225
    %247 = vmatprep.subr.bf16.mxu0 0
    %248 = vmatpush1.bf16.msra.mxu0 %v226
    %249 = vmatprep.subr.bf16.mxu0 0
    %250 = vmatpush1.bf16.msra.mxu0 %v227
    %251 = vmatprep.subr.bf16.mxu0 0
    %252 = vmatpush1.bf16.msra.mxu0 %v228
    %253 = vmatprep.subr.bf16.mxu0 0
    %254 = vmatpush1.bf16.msra.mxu0 0
    %255 = vmatprep.subr.bf16.mxu0 0
    %256 = vmatpush1.bf16.msra.mxu0 0
    %257 = vmatprep.subr.bf16.mxu0 0
    %258 = vmatpush1.bf16.msra.mxu0 0
    %259 = vmatprep.subr.bf16.mxu0 0
    %260 = vmatpush1.bf16.msra.mxu0 0
    %261 = vmatprep.subr.bf16.mxu0 0
    %262 = vmatpush1.bf16.msra.mxu0 0
    %263 = vmatprep.subr.bf16.mxu0 0
    %264 = vmatpush1.bf16.msra.mxu0 0
    %265 = vmatprep.subr.bf16.mxu0 0
    %266 = vmatpush1.bf16.msra.mxu0 0
    %267 = vmatprep.subr.bf16.mxu0 0
    %268 = vmatpush1.bf16.msra.mxu0 0
    %269 = vmatprep.mubr.bf16.mxu0 0
    %270 = vmatmul.mubr.bf16.gmra.mrb[0].mxu0 %v172
    %v271 = vpop.f32.mrb[0].mxu0
    %v272 = vadd.f32 0.0, %v271
    %v273 = vpop.f32.mrb[0].mxu0
    %v274 = vpop.f32.mrb[0].mxu0
    %v275 = vpop.f32.mrb[0].mxu0
    %276 = vdwg.mxu0
    %277 = vst [vmem:[#allocation8] sm:$0xff] %v272
    // Predicated region
    $region30: #{tpu_custom_call.1} parent=1 // pred_check
      _
    $region31: #{tpu_custom_call.1} parent=1 // pred_check_branch
      %279 = sbr.rel (0) target = $region33
    $region32: #{tpu_custom_call.1} parent=1 // pred_region
      %s281 = ssub.s32 128, 128
      %282 = vsyncadd [#allocation4], %s281
      %s284 = sshll.u32 [#allocation8], 4
      %s285 = int_to_ptr.vmem [resolvable:$true] %s284
      %287 = dma.vmem_to_hbm [thread:$0]  %s285, 128, %s4, [#allocation4]
    $region33: #{tpu_custom_call.1} parent=1 // pred_fallthru
      _
    // Predicated region
    $region34: #{tpu_custom_call.1} parent=1 // pred_check
      _
    $region35: #{tpu_custom_call.1} parent=1 // pred_check_branch
      %289 = sbr.rel (0) target = $region37
    $region36: #{tpu_custom_call.1} parent=1 // pred_region
      %290 = dma.done [#allocation4], 128
    $region37: #{tpu_custom_call.1} parent=1 // pred_fallthru
      _
    %291 = vsyncpa [#allocation3], 1
    %292 = vsyncpa [#allocation6], 1
    %293 = vsyncpa [#allocation4], 1

</llo_original>
